<compile_context>
chip_gen: v7x
topology: tpu7x:2x2x1
jax: 0.10.0
libtpu: 0.0.40
codegen_flags: <defaults>
</compile_context>

<pallas_src>
from functools import partial

import jax
import jax.numpy as jnp
from jax.experimental import pallas as pl
from jax.experimental.pallas import tpu as pltpu


def _cdiv(a, b):
    return -(-a // b)


def _round_up(v, m):
    return _cdiv(v, m) * m


def _normalize_kernel(x_ref, o_ref, *, denom):
    # Elementwise: widen to f32 and divide by (n_levels - 1), store in out dtype.
    xf = x_ref[...].astype(jnp.float32)
    o_ref[...] = (xf / jnp.float32(denom)).astype(o_ref.dtype)


def _chip_defaults():
    """Returns (target f32-out block bytes, tensorcores per chip) by TPU gen."""
    kind = ""
    try:
        kind = jax.devices()[0].device_kind.lower()
    except Exception:  # defensive: fall back to conservative settings
        pass
    if "v7" in kind:
        # ~3.2 TB/s HBM: larger blocks to amortize per-step overhead.
        # 2 * (4 MiB in + 4 MiB out) = 16 MiB < 32 MiB scoped-VMEM default.
        return 4 * 1024 * 1024, 2
    if "v6" in kind:
        # 2 * (3 + 3) = 12 MiB < 32 MiB scoped default; ~1-2% over 2 MiB blocks.
        return 3 * 1024 * 1024, 1
    # v5e (16 MiB scoped default) and unknown chips: 2*(2+2)=8 MiB is safe and
    # already amortizes the per-step overhead at ~0.82 TB/s HBM.
    return 2 * 1024 * 1024, 1


def normalize_softmax_output(x, n_levels, dim=-1, *, out_dtype=jnp.float32,
                             target_block_bytes=None, use_pallas=True):
    """JAX/Pallas equivalent of NormalizeSoftmaxOutput.forward.

    x: any-shaped integer (or float) array.  Returns `out_dtype` array of the
    same shape equal to x.astype(f32) / (n_levels - 1).
    Note: inputs with magnitude > 2^24 lose precision in the f32 cast, matching
    PyTorch .float() semantics.
    """
    del dim  # unused in the forward pass; kept for API parity with the module
    orig_shape = x.shape
    n = x.size
    denom = float(n_levels) - 1.0
    out_dtype = jnp.dtype(out_dtype)

    def _jnp_path(v):
        return (v.astype(jnp.float32) / jnp.float32(denom)).astype(out_dtype)

    if n == 0:
        return jnp.zeros(orig_shape, dtype=out_dtype)

    x_flat = x.reshape(-1)  # layout-preserving reshape: free under XLA

    # Small or non-128-aligned inputs: a fused jnp expression is already at
    # roofline and avoids the pad + output-slice HBM passes that a padded
    # pallas_call would need.  Also the recommended path inside a larger jit.
    if (not use_pallas) or n < 1024 or n % 128 != 0:
        return _jnp_path(x_flat).reshape(orig_shape)

    chip_block_bytes, num_cores = _chip_defaults()
    if target_block_bytes is None:
        target_block_bytes = chip_block_bytes

    # Widest lane-dense view that divides the flat size exactly (no padding).
    lane = 128
    for cand in (512, 256, 128):
        if n % cand == 0:
            lane = cand
            break
    rows = n // lane
    x2d = x_flat.reshape(rows, lane)

    # Block rows from the per-buffer byte budget (multiple of 8, or full rows).
    bytes_per_elem = max(x2d.dtype.itemsize, out_dtype.itemsize)
    rows_budget = max(8, target_block_bytes // (lane * bytes_per_elem))
    block_rows = min(rows, rows_budget)

    # Megacore (v7x): ensure at least 2 blocks so both TensorCores get work.
    if num_cores >= 2 and rows >= 16:
        block_rows = min(block_rows, _round_up(_cdiv(rows, 2), 8))

    if block_rows < rows:
        block_rows = _round_up(block_rows, 8)
        if block_rows >= rows:
            block_rows = rows  # full-extent block is always legal

    n_blocks = _cdiv(rows, block_rows)

    # Prefer an even block count on multi-TC chips for a balanced "parallel" split.
    if num_cores >= 2 and n_blocks > 1 and n_blocks % 2 == 1:
        cand_rows = _round_up(_cdiv(rows, n_blocks + 1), 8)
        if 8 <= cand_rows < rows:
            block_rows = cand_rows
            n_blocks = _cdiv(rows, block_rows)

    out2d = pl.pallas_call(
        partial(_normalize_kernel, denom=denom),
        out_shape=jax.ShapeDtypeStruct((rows, lane), out_dtype),
        grid_spec=pltpu.PrefetchScalarGridSpec(
            num_scalar_prefetch=0,
            grid=(n_blocks,),
            in_specs=[pl.BlockSpec((block_rows, lane), lambda i: (i, 0))],
            out_specs=pl.BlockSpec((block_rows, lane), lambda i: (i, 0)),
        ),
        compiler_params=pltpu.CompilerParams(
            dimension_semantics=("parallel",),
        ),
    )(x2d)

    return out2d.reshape(orig_shape)


if __name__ == "__main__":
    key = jax.random.PRNGKey(0)
    n_levels = 256

    # NCHW "integer softmax output" style input: batch=2, channels=4, 16x16.
    x = jax.random.randint(key, (2, 4, 16, 16), minval=0, maxval=n_levels,
                           dtype=jnp.int32)
    y = jax.block_until_ready(normalize_softmax_output(x, n_levels=n_levels, dim=-1))
    y_ref = x.astype(jnp.float32) / (n_levels - 1.0)
    assert y.shape == x.shape and y.dtype == jnp.float32
    assert jnp.allclose(y, y_ref, atol=1e-6)

    # Non-multiple-of-128 / tiny input -> fused jnp fallback (no pad/slice passes).
    x2 = jax.random.randint(jax.random.PRNGKey(1), (3, 5, 7), minval=0,
                            maxval=n_levels, dtype=jnp.int32)
    y2 = jax.block_until_ready(normalize_softmax_output(x2, n_levels=n_levels, dim=-1))
    y2_ref = x2.astype(jnp.float32) / (n_levels - 1.0)
    assert y2.shape == x2.shape and y2.dtype == jnp.float32
    assert jnp.allclose(y2, y2_ref, atol=1e-6)

    # Optional bf16 output (halves the HBM write stream on the Pallas path).
    y3 = jax.block_until_ready(
        normalize_softmax_output(x, n_levels=n_levels, out_dtype=jnp.bfloat16))
    assert y3.shape == x.shape and y3.dtype == jnp.bfloat16
    assert jnp.allclose(y3.astype(jnp.float32), y_ref, atol=5e-3)

    print("KERNEL_OK")
</pallas_src>

<mosaic_0001>
module attributes {stable_mosaic.version = 11 : i64} {
  func.func @_normalize_kernel(%arg0: i32, %arg1: memref<4x512xi32, #tpu.memory_space<vmem>>, %arg2: memref<4x512xf32, #tpu.memory_space<vmem>>) attributes {dimension_semantics = [#tpu.dimension_semantics<parallel>], iteration_bounds = array<i64: 1>, scalar_prefetch = 0 : i64, scratch_operands = 0 : i64, tpu.core_type = #tpu.core_type<tc>, window_params = [{transform_indices = @transform_0, window_bounds = array<i64: 4, 512>}, {transform_indices = @transform_1, window_bounds = array<i64: 4, 512>}]} {
    %c0 = arith.constant 0 : index
    %c0_0 = arith.constant 0 : index
    %0 = vector.load %arg1[%c0, %c0_0] : memref<4x512xi32, #tpu.memory_space<vmem>>, vector<4x512xi32>
    %1 = arith.sitofp %0 : vector<4x512xi32> to vector<4x512xf32>
    %cst = arith.constant 2.550000e+02 : f32
    %2 = vector.broadcast %cst : f32 to vector<4x512xf32>
    %3 = arith.divf %1, %2 : vector<4x512xf32>
    %c0_1 = arith.constant 0 : index
    %c0_2 = arith.constant 0 : index
    %4 = vector.load %arg2[%c0_1, %c0_2] : memref<4x512xf32, #tpu.memory_space<vmem>>, vector<4x512xf32>
    tpu.vector_store %arg2[%c0_1, %c0_2], %3 {strides = array<i32>} : memref<4x512xf32, #tpu.memory_space<vmem>>, vector<4x512xf32>,
    return
  }
  func.func @transform_0(%arg0: i32) -> (i32, i32) {
    %c0_i32 = arith.constant 0 : i32
    %c0_i32_0 = arith.constant 0 : i32
    return %arg0, %c0_i32 : i32, i32
  }
  func.func @transform_1(%arg0: i32) -> (i32, i32) {
    %c0_i32 = arith.constant 0 : i32
    %c0_i32_0 = arith.constant 0 : i32
    return %arg0, %c0_i32 : i32, i32
  }
}

</mosaic_0001>

<llo_original>
// kernel: tpu_custom_call.1
$region0: #{tpu_custom_call.1}
  #allocation0 [shape = 'u32[]', space=smem, size = 0x4, offset = 0x4, fixed_abs, tag = 'smem constant byte address 0x4 - core index']
  #allocation1 [shape = 'u32[144,128]{1,0:T(1,128)}', space=vmem, size = 0x12000, scoped, tag = 'internal scratch']
  %s0 = inlined_call_operand.hbm [shape: s32[4,512], index: 0, kind: input, shape index: {}]
  %s1 = inlined_call_operand.hbm [shape: f32[4,512], index: 1, kind: output, shape index: {}]
  %s2 = sld [smem:[#allocation0]]
  $region18: #{tpu_custom_call.1} parent=0
    _
  %s4 = ssub.s32 1, %s2
  %s5 = scalar_select 0, %s4, %s2
  $region1: #{tpu_custom_call.1} parent=0
    #allocation2 [shape = 'u8[8192]{0}', space=vmem, size = 0x2000, scoped, tag = 'input window, operand 0, single buffered']
    #allocation3 [shape = 's32[1]{0}', space=sflag, size = 0x4, scoped, tag = 'scoped memory for tpu_custom_call.1']
    #allocation4 [shape = 's32[1]{0}', space=sflag, size = 0x4, scoped, tag = 'scoped memory for tpu_custom_call.1']
    #allocation5 [shape = 'u8[8192]{0}', space=vmem, size = 0x2000, scoped, tag = 'output window, operand 0, single buffered']
    %6 = vsyncpa [#allocation3], 0
    %7 = vsyncpa [#allocation4], 0
    // Predicated region
    $region2: #{tpu_custom_call.1} parent=1 // pred_check
      _
    $region3: #{tpu_custom_call.1} parent=1 // pred_check_branch
      %9 = sbr.rel (0) target = $region5
    $region4: #{tpu_custom_call.1} parent=1 // pred_region
      %s11 = ssub.s32 256, 256
      %12 = vsyncadd [#allocation3], %s11
      %s14 = sshll.u32 [#allocation2], 4
      %s15 = int_to_ptr.vmem [resolvable:$true] %s14
      %17 = dma.hbm_to_vmem [thread:$0]  %s0, 256, %s15, [#allocation3]
    $region5: #{tpu_custom_call.1} parent=1 // pred_fallthru
      _
    // Predicated region
    $region6: #{tpu_custom_call.1} parent=1 // pred_check
      _
    $region7: #{tpu_custom_call.1} parent=1 // pred_check_branch
      %19 = sbr.rel (0) target = $region9
    $region8: #{tpu_custom_call.1} parent=1 // pred_region
      %20 = dma.done [#allocation3], 256
    $region9: #{tpu_custom_call.1} parent=1 // pred_fallthru
      _
    %v21 = vld [vmem:[#allocation2] sm:$0xff]
    %v22 = vld [vmem:[#allocation2 + $0x8] sm:$0xff]
    %v23 = vcvt.s32.f32 %v21
    %v24 = vcvt.s32.f32 %v22
    %v25 = vrcp.pop 255.0
    %v26 = vmul.f32 %v23, %v25
    %v27 = vmul.f32 %v24, %v25
    %28 = vst [vmem:[#allocation5] sm:$0xff] %v26
    %29 = vst [vmem:[#allocation5 + $0x8] sm:$0xff] %v27
    // Predicated region
    $region10: #{tpu_custom_call.1} parent=1 // pred_check
      _
    $region11: #{tpu_custom_call.1} parent=1 // pred_check_branch
      %31 = sbr.rel (0) target = $region13
    $region12: #{tpu_custom_call.1} parent=1 // pred_region
      %s33 = ssub.s32 256, 256
      %34 = vsyncadd [#allocation4], %s33
      %s36 = sshll.u32 [#allocation5], 4
      %s37 = int_to_ptr.vmem [resolvable:$true] %s36
      %39 = dma.vmem_to_hbm [thread:$0]  %s37, 256, %s1, [#allocation4]
    $region13: #{tpu_custom_call.1} parent=1 // pred_fallthru
      _
    // Predicated region
    $region14: #{tpu_custom_call.1} parent=1 // pred_check
      _
    $region15: #{tpu_custom_call.1} parent=1 // pred_check_branch
      %41 = sbr.rel (0) target = $region17
    $region16: #{tpu_custom_call.1} parent=1 // pred_region
      %42 = dma.done [#allocation4], 256
    $region17: #{tpu_custom_call.1} parent=1 // pred_fallthru
      _
    %43 = vsyncpa [#allocation3], 1
    %44 = vsyncpa [#allocation4], 1

</llo_original>
